<compile_context>
chip_gen: v5e
topology: v5e:2x2
jax: 0.10.0
libtpu: 0.0.40
codegen_flags: <defaults>
</compile_context>

<pallas_src>
import functools

import jax
import jax.numpy as jnp
import numpy as np
from jax import lax
from jax.experimental import pallas as pl
from jax.experimental.pallas import tpu as pltpu

IGNORE_INDEX = 255
DS_WEIGHT = 0.4

HW_TILE_MAX = 32768                    # max pixels (lanes) per grid step


def _vmem_plan():
    """Generation-aware VMEM budgets (v7x: 64 MiB/TC; v5e/v6e: 128 MiB)."""
    try:
        cap = int(pltpu.get_tpu_info().vmem_capacity_bytes)
    except Exception:
        cap = 64 * 1024 * 1024          # conservative fallback (v7x-sized)
    tile_budget = min(int(cap * 0.70), 64 * 1024 * 1024)   # for tile selection
    vmem_limit = min(tile_budget + (16 << 20), int(cap * 0.90))
    return tile_budget, vmem_limit


def _pick_hw_tile(hw, num_classes, n_heads, itemsize, tile_budget):
    """Pick the lane-axis tile: large, 128-aligned, fits the VMEM budget.

    No divisibility requirement on H*W: grid = cdiv(HW, tile) and the kernel's
    `pix < hw_total` mask handles the partial tail block.
    """
    bytes_per_col = (
        2 * (n_heads * num_classes * itemsize + 4)  # double-buffered logits + i32 target
        + 4 * num_classes * 4                       # ~4 block-sized f32 in-kernel temporaries
        + 2 * 8 * 4                                 # lane accumulators (sublane-padded f32)
    )
    cap = min(HW_TILE_MAX, max(128, tile_budget // bytes_per_col))
    if hw <= cap:
        return hw                                   # whole axis: block dim == full array dim
    return max(128, (cap // 128) * 128)             # largest 128-multiple under the cap


def _ce_sum_kernel(*refs, ignore_index, weights, hw_total, hw_tile):
    """Accumulate weighted CE sum + valid-pixel count per image.

    refs = (*logits_refs[n_heads], target_ref, sum_ref, cnt_ref, sum_acc, cnt_acc)
      logits_ref block: (1, C, hw_tile)  -- C on sublanes, pixels on lanes
      target_ref block: (1, 1, hw_tile)  int32
      sum_ref / cnt_ref: (1, 1, 1) f32 per-image outputs (resident across j)
      sum_acc / cnt_acc: (1, hw_tile) f32 VMEM lane accumulators (scratch)
    """
    n_heads = len(weights)
    logits_refs = refs[:n_heads]
    target_ref = refs[n_heads]
    sum_ref, cnt_ref = refs[n_heads + 1], refs[n_heads + 2]
    sum_acc, cnt_acc = refs[n_heads + 3], refs[n_heads + 4]

    j = pl.program_id(1)

    @pl.when(j == 0)
    def _():
        sum_acc[...] = jnp.zeros_like(sum_acc)
        cnt_acc[...] = jnp.zeros_like(cnt_acc)

    t = target_ref[0]                                           # (1, hw_tile) i32
    # Tail mask: true pixel index within this image vs. actual H*W.  Must stay:
    # the tail block's VMEM holds stale/garbage data past the array end.
    pix = j * hw_tile + lax.broadcasted_iota(jnp.int32, t.shape, 1)
    valid = (t != ignore_index) & (pix < hw_total)              # (1, hw_tile) bool
    valid_f = valid.astype(jnp.float32)

    # Class-index compare hoisted out of the head loop (shared by all heads).
    num_classes = logits_refs[0].shape[1]
    cls = lax.broadcasted_iota(jnp.int32, (num_classes, hw_tile), 0)
    tmask = cls == t                                            # (C, hw_tile) bool

    total = None
    for h, w in enumerate(weights):
        x = logits_refs[h][0].astype(jnp.float32)               # (C, hw_tile)
        m = jnp.max(x, axis=0, keepdims=True)                   # (1, hw_tile)
        xs = x - m                                              # shifted once, reused twice
        sum_exp = jnp.sum(jnp.exp(xs), axis=0, keepdims=True)
        # Target logit from the shifted tensor: lse - x[t] == log(sum_exp) - (x[t] - m).
        tgt_shift = jnp.sum(jnp.where(tmask, xs, 0.0), axis=0, keepdims=True)
        per_pix = jnp.where(valid, jnp.log(sum_exp) - tgt_shift, 0.0)
        per_pix = per_pix if w == 1.0 else jnp.float32(w) * per_pix
        total = per_pix if total is None else total + per_pix

    # Elementwise (VPU) accumulation; no per-step cross-lane reductions.
    sum_acc[...] += total
    cnt_acc[...] += valid_f

    @pl.when(j == pl.num_programs(1) - 1)
    def _():
        sum_ref[...] = jnp.sum(sum_acc[...]).reshape(1, 1, 1)
        cnt_ref[...] = jnp.sum(cnt_acc[...]).reshape(1, 1, 1)


def _fused_ce_loss(logits_list, weights, target, ignore_index, hw_tile_override=None):
    """sum_h weights[h] * CE_mean(logits_list[h], target) in one pallas_call."""
    N, C, H, W = logits_list[0].shape
    HW = H * W
    n_heads = len(logits_list)
    itemsize = jnp.dtype(logits_list[0].dtype).itemsize

    tile_budget, vmem_limit = _vmem_plan()
    if hw_tile_override is not None:
        hw_tile = int(hw_tile_override)              # test hook (must be 128-mult or == HW)
    else:
        hw_tile = _pick_hw_tile(HW, C, n_heads, itemsize, tile_budget)
    num_hw_blocks = pl.cdiv(HW, hw_tile)

    # Free reshapes (no data movement): NCHW -> [N, C, H*W], target -> [N, 1, H*W].
    logits3 = [x.reshape(N, C, HW) for x in logits_list]
    tgt3 = target.reshape(N, 1, HW).astype(jnp.int32)

    kernel = functools.partial(
        _ce_sum_kernel,
        ignore_index=ignore_index,
        weights=tuple(float(w) for w in weights),
        hw_total=HW,
        hw_tile=hw_tile,
    )

    logits_spec = pl.BlockSpec((1, C, hw_tile), lambda n, j: (n, 0, j))
    target_spec = pl.BlockSpec((1, 1, hw_tile), lambda n, j: (n, 0, j))
    out_spec = pl.BlockSpec((1, 1, 1), lambda n, j: (n, 0, 0))

    sum_out, cnt_out = pl.pallas_call(
        kernel,
        out_shape=(
            jax.ShapeDtypeStruct((N, 1, 1), jnp.float32),
            jax.ShapeDtypeStruct((N, 1, 1), jnp.float32),
        ),
        grid_spec=pltpu.PrefetchScalarGridSpec(
            num_scalar_prefetch=0,
            grid=(N, num_hw_blocks),
            in_specs=[logits_spec] * n_heads + [target_spec],
            out_specs=[out_spec, out_spec],
            scratch_shapes=[
                pltpu.VMEM((1, hw_tile), jnp.float32),   # weighted-loss lane accumulator
                pltpu.VMEM((1, hw_tile), jnp.float32),   # valid-count lane accumulator
            ],
        ),
        compiler_params=pltpu.CompilerParams(
            # N is independent across images -> "parallel" (uses both TCs on v7x,
            # no-op on single-TC v5e/v6e).  j is a reduction into per-image state.
            dimension_semantics=("parallel", "arbitrary"),
            vmem_limit_bytes=int(vmem_limit),
        ),
    )(*logits3, tgt3)

    # Global mean over all non-ignored pixels of the whole batch.
    # NOTE: if every pixel is ignored this is 0/0 -> NaN, matching torch.
    return jnp.sum(sum_out) / jnp.sum(cnt_out)


def criterion_dsn(preds, target, *, ignore_index=IGNORE_INDEX,
                  ds_weight=DS_WEIGHT):
    """Forward pass of CriterionDSN.

    preds: list of NCHW logits (len >= 1) or dict {'pred','deepsup'};
    target: [N, H, W] int labels (or dict {'ori': ...} when preds is a dict).
    """
    # TODO(synk): balance_weight=True (per-class weights) is not implemented;
    # the reference module defaults to weight=None.
    if isinstance(preds, (list, tuple)):
        if len(preds) >= 2:
            logits_list = [preds[0], preds[1]]
            weights = (1.0, ds_weight)
        else:
            logits_list = [preds[0]]
            weights = (1.0,)
        tgt = target
    elif isinstance(preds, dict):
        logits_list = [preds['pred'], preds['deepsup']]
        weights = (1.0, ds_weight)
        tgt = target['ori']
    else:
        raise TypeError("preds must be a list/tuple or dict")

    loss = _fused_ce_loss(logits_list, weights, tgt, ignore_index)
    return {'loss': loss}


def _reference_ce_mean(logits_nchw, target_nhw, ignore_index):
    """Pure-JAX reference (matches torch CrossEntropyLoss mean + ignore_index)."""
    N, C, H, W = logits_nchw.shape
    x = jnp.transpose(logits_nchw, (0, 2, 3, 1)).reshape(-1, C).astype(jnp.float32)
    t = target_nhw.reshape(-1).astype(jnp.int32)
    lse = jax.scipy.special.logsumexp(x, axis=-1)
    tgt = jnp.take_along_axis(x, jnp.clip(t, 0, C - 1)[:, None], axis=-1)[:, 0]
    valid = (t != ignore_index).astype(jnp.float32)
    return jnp.sum((lse - tgt) * valid) / jnp.sum(valid)


if __name__ == "__main__":
    key = jax.random.PRNGKey(0)
    k1, k2, k3, k4, k5, k6, k7 = jax.random.split(key, 7)

    N, C, H, W = 2, 4, 16, 16
    pred_main = jax.random.normal(k1, (N, C, H, W), dtype=jnp.float32)
    pred_deep = jax.random.normal(k2, (N, C, H, W), dtype=jnp.float32)
    target = jax.random.randint(k3, (N, H, W), 0, C, dtype=jnp.int32)
    # Sprinkle in some ignored pixels to exercise the ignore_index mask.
    ignore_mask = jax.random.uniform(k4, (N, H, W)) < 0.1
    target = jnp.where(ignore_mask, IGNORE_INDEX, target)

    ref = (_reference_ce_mean(pred_main, target, IGNORE_INDEX)
           + DS_WEIGHT * _reference_ce_mean(pred_deep, target, IGNORE_INDEX))

    # Fused two-head path (list input).
    out = criterion_dsn([pred_main, pred_deep], target)
    loss = jax.block_until_ready(out['loss'])
    np.testing.assert_allclose(np.asarray(loss), np.asarray(ref),
                               rtol=1e-5, atol=1e-5)

    # Single-head path.
    out1 = criterion_dsn([pred_main], target)
    loss1 = jax.block_until_ready(out1['loss'])
    ref1 = _reference_ce_mean(pred_main, target, IGNORE_INDEX)
    np.testing.assert_allclose(np.asarray(loss1), np.asarray(ref1),
                               rtol=1e-5, atol=1e-5)

    # Dict path.
    out_d = criterion_dsn({'pred': pred_main, 'deepsup': pred_deep},
                          {'ori': target})
    loss_d = jax.block_until_ready(out_d['loss'])
    np.testing.assert_allclose(np.asarray(loss_d), np.asarray(ref),
                               rtol=1e-5, atol=1e-5)

    # Non-divisible H*W with a forced small tile: exercises the partial tail
    # block (stale-VMEM masking) path that production-size crops hit.
    Ht, Wt = 17, 17                                   # H*W = 289, not a 128-multiple
    pm_t = jax.random.normal(k5, (N, C, Ht, Wt), dtype=jnp.float32)
    pd_t = jax.random.normal(k6, (N, C, Ht, Wt), dtype=jnp.float32)
    tg_t = jax.random.randint(k7, (N, Ht, Wt), 0, C, dtype=jnp.int32)
    tg_t = jnp.where(jax.random.uniform(k4, (N, Ht, Wt)) < 0.1, IGNORE_INDEX, tg_t)
    loss_t = jax.block_until_ready(
        _fused_ce_loss([pm_t, pd_t], (1.0, DS_WEIGHT), tg_t, IGNORE_INDEX,
                       hw_tile_override=128))
    ref_t = (_reference_ce_mean(pm_t, tg_t, IGNORE_INDEX)
             + DS_WEIGHT * _reference_ce_mean(pd_t, tg_t, IGNORE_INDEX))
    np.testing.assert_allclose(np.asarray(loss_t), np.asarray(ref_t),
                               rtol=1e-5, atol=1e-5)

    print("KERNEL_OK")
</pallas_src>

<mosaic_0001>
module attributes {stable_mosaic.version = 11 : i64} {
  func.func @_ce_sum_kernel(%arg0: i32, %arg1: i32, %arg2: memref<1x4x256xf32, #tpu.memory_space<vmem>>, %arg3: memref<1x4x256xf32, #tpu.memory_space<vmem>>, %arg4: memref<1x1x256xi32, #tpu.memory_space<vmem>>, %arg5: memref<1x1x1xf32, #tpu.memory_space<vmem>>, %arg6: memref<1x1x1xf32, #tpu.memory_space<vmem>>, %arg7: memref<1x256xf32, #tpu.memory_space<vmem>>, %arg8: memref<1x256xf32, #tpu.memory_space<vmem>>) attributes {dimension_semantics = [#tpu.dimension_semantics<parallel>, #tpu.dimension_semantics<arbitrary>], iteration_bounds = array<i64: 2, 1>, scalar_prefetch = 0 : i64, scratch_operands = 2 : i64, tpu.core_type = #tpu.core_type<tc>, window_params = [{transform_indices = @transform_0, window_bounds = array<i64: 1, 4, 256>}, {transform_indices = @transform_1, window_bounds = array<i64: 1, 4, 256>}, {transform_indices = @transform_2, window_bounds = array<i64: 1, 1, 256>}, {transform_indices = @transform_3, window_bounds = array<i64: 1, 1, 1>}, {transform_indices = @transform_4, window_bounds = array<i64: 1, 1, 1>}]} {
    %c0_i32 = arith.constant 0 : i32
    %0 = arith.cmpi eq, %arg1, %c0_i32 : i32
    %1 = arith.extui %0 : i1 to i32
    %c0_i32_0 = arith.constant 0 : i32
    %2 = arith.cmpi ne, %1, %c0_i32_0 : i32
    scf.if %2 {
      %cst_30 = arith.constant 0.000000e+00 : f32
      %65 = vector.broadcast %cst_30 : f32 to vector<1x256xf32>
      %c0_31 = arith.constant 0 : index
      %c0_32 = arith.constant 0 : index
      %66 = vector.load %arg7[%c0_31, %c0_32] : memref<1x256xf32, #tpu.memory_space<vmem>>, vector<1x256xf32>
      tpu.vector_store %arg7[%c0_31, %c0_32], %65 {strides = array<i32>} : memref<1x256xf32, #tpu.memory_space<vmem>>, vector<1x256xf32>,
      %cst_33 = arith.constant 0.000000e+00 : f32
      %67 = vector.broadcast %cst_33 : f32 to vector<1x256xf32>
      %c0_34 = arith.constant 0 : index
      %c0_35 = arith.constant 0 : index
      %68 = vector.load %arg8[%c0_34, %c0_35] : memref<1x256xf32, #tpu.memory_space<vmem>>, vector<1x256xf32>
      tpu.vector_store %arg8[%c0_34, %c0_35], %67 {strides = array<i32>} : memref<1x256xf32, #tpu.memory_space<vmem>>, vector<1x256xf32>,
    } else {
    }
    %c0 = arith.constant 0 : index
    %c0_1 = arith.constant 0 : index
    %c0_2 = arith.constant 0 : index
    %3 = vector.load %arg4[%c0, %c0_1, %c0_2] : memref<1x1x256xi32, #tpu.memory_space<vmem>>, vector<1x1x256xi32>
    %4 = vector.shape_cast %3 : vector<1x1x256xi32> to vector<1x256xi32>
    %c256_i32 = arith.constant 256 : i32
    %5 = arith.muli %arg1, %c256_i32 : i32
    %6 = tpu.iota {dimensions = array<i32: 1>} : vector<1x256xi32>
    %7 = vector.broadcast %5 : i32 to vector<1x256xi32>
    %8 = arith.addi %7, %6 : vector<1x256xi32>
    %c255_i32 = arith.constant 255 : i32
    %9 = vector.broadcast %c255_i32 : i32 to vector<1x256xi32>
    %10 = arith.cmpi ne, %4, %9 : vector<1x256xi32>
    %c256_i32_3 = arith.constant 256 : i32
    %11 = vector.broadcast %c256_i32_3 : i32 to vector<1x256xi32>
    %12 = arith.cmpi slt, %8, %11 : vector<1x256xi32>
    %13 = arith.andi %10, %12 : vector<1x256xi1>
    %14 = arith.extui %13 : vector<1x256xi1> to vector<1x256xi32>
    %15 = arith.sitofp %14 : vector<1x256xi32> to vector<1x256xf32>
    %16 = tpu.iota {dimensions = array<i32: 0>} : vector<4x256xi32>
    %17 = vector.broadcast %4 : vector<1x256xi32> to vector<4x256xi32>
    %18 = arith.cmpi eq, %16, %17 : vector<4x256xi32>
    %c0_4 = arith.constant 0 : index
    %c0_5 = arith.constant 0 : index
    %c0_6 = arith.constant 0 : index
    %19 = vector.load %arg2[%c0_4, %c0_5, %c0_6] : memref<1x4x256xf32, #tpu.memory_space<vmem>>, vector<1x4x256xf32>
    %20 = vector.shape_cast %19 : vector<1x4x256xf32> to vector<4x256xf32>
    %cst = arith.constant dense<0xFF800000> : vector<256xf32>
    %21 = vector.multi_reduction <maximumf>, %20, %cst [0] : vector<4x256xf32> to vector<256xf32>
    %22 = vector.shape_cast %21 : vector<256xf32> to vector<1x256xf32>
    %23 = vector.broadcast %22 : vector<1x256xf32> to vector<4x256xf32>
    %24 = arith.subf %20, %23 : vector<4x256xf32>
    %25 = math.exp %24 : vector<4x256xf32>
    %cst_7 = arith.constant dense<0.000000e+00> : vector<256xf32>
    %26 = vector.multi_reduction <add>, %25, %cst_7 [0] : vector<4x256xf32> to vector<256xf32>
    %27 = vector.shape_cast %26 : vector<256xf32> to vector<1x256xf32>
    %cst_8 = arith.constant 0.000000e+00 : f32
    %28 = vector.broadcast %cst_8 : f32 to vector<4x256xf32>
    %29 = arith.select %18, %24, %28 : vector<4x256xi1>, vector<4x256xf32>
    %cst_9 = arith.constant dense<0.000000e+00> : vector<256xf32>
    %30 = vector.multi_reduction <add>, %29, %cst_9 [0] : vector<4x256xf32> to vector<256xf32>
    %31 = vector.shape_cast %30 : vector<256xf32> to vector<1x256xf32>
    %32 = math.log %27 : vector<1x256xf32>
    %33 = arith.subf %32, %31 : vector<1x256xf32>
    %cst_10 = arith.constant 0.000000e+00 : f32
    %34 = vector.broadcast %cst_10 : f32 to vector<1x256xf32>
    %35 = arith.select %13, %33, %34 : vector<1x256xi1>, vector<1x256xf32>
    %c0_11 = arith.constant 0 : index
    %c0_12 = arith.constant 0 : index
    %c0_13 = arith.constant 0 : index
    %36 = vector.load %arg3[%c0_11, %c0_12, %c0_13] : memref<1x4x256xf32, #tpu.memory_space<vmem>>, vector<1x4x256xf32>
    %37 = vector.shape_cast %36 : vector<1x4x256xf32> to vector<4x256xf32>
    %cst_14 = arith.constant dense<0xFF800000> : vector<256xf32>
    %38 = vector.multi_reduction <maximumf>, %37, %cst_14 [0] : vector<4x256xf32> to vector<256xf32>
    %39 = vector.shape_cast %38 : vector<256xf32> to vector<1x256xf32>
    %40 = vector.broadcast %39 : vector<1x256xf32> to vector<4x256xf32>
    %41 = arith.subf %37, %40 : vector<4x256xf32>
    %42 = math.exp %41 : vector<4x256xf32>
    %cst_15 = arith.constant dense<0.000000e+00> : vector<256xf32>
    %43 = vector.multi_reduction <add>, %42, %cst_15 [0] : vector<4x256xf32> to vector<256xf32>
    %44 = vector.shape_cast %43 : vector<256xf32> to vector<1x256xf32>
    %cst_16 = arith.constant 0.000000e+00 : f32
    %45 = vector.broadcast %cst_16 : f32 to vector<4x256xf32>
    %46 = arith.select %18, %41, %45 : vector<4x256xi1>, vector<4x256xf32>
    %cst_17 = arith.constant dense<0.000000e+00> : vector<256xf32>
    %47 = vector.multi_reduction <add>, %46, %cst_17 [0] : vector<4x256xf32> to vector<256xf32>
    %48 = vector.shape_cast %47 : vector<256xf32> to vector<1x256xf32>
    %49 = math.log %44 : vector<1x256xf32>
    %50 = arith.subf %49, %48 : vector<1x256xf32>
    %cst_18 = arith.constant 0.000000e+00 : f32
    %51 = vector.broadcast %cst_18 : f32 to vector<1x256xf32>
    %52 = arith.select %13, %50, %51 : vector<1x256xi1>, vector<1x256xf32>
    %cst_19 = arith.constant 4.000000e-01 : f32
    %53 = vector.broadcast %cst_19 : f32 to vector<1x256xf32>
    %54 = arith.mulf %53, %52 : vector<1x256xf32>
    %55 = arith.addf %35, %54 : vector<1x256xf32>
    %c0_20 = arith.constant 0 : index
    %c0_21 = arith.constant 0 : index
    %56 = vector.load %arg7[%c0_20, %c0_21] : memref<1x256xf32, #tpu.memory_space<vmem>>, vector<1x256xf32>
    %57 = arith.addf %56, %55 : vector<1x256xf32>
    %c0_22 = arith.constant 0 : index
    %c0_23 = arith.constant 0 : index
    %58 = vector.load %arg7[%c0_22, %c0_23] : memref<1x256xf32, #tpu.memory_space<vmem>>, vector<1x256xf32>
    tpu.vector_store %arg7[%c0_22, %c0_23], %57 {strides = array<i32>} : memref<1x256xf32, #tpu.memory_space<vmem>>, vector<1x256xf32>,
    %c0_24 = arith.constant 0 : index
    %c0_25 = arith.constant 0 : index
    %59 = vector.load %arg8[%c0_24, %c0_25] : memref<1x256xf32, #tpu.memory_space<vmem>>, vector<1x256xf32>
    %60 = arith.addf %59, %15 : vector<1x256xf32>
    %c0_26 = arith.constant 0 : index
    %c0_27 = arith.constant 0 : index
    %61 = vector.load %arg8[%c0_26, %c0_27] : memref<1x256xf32, #tpu.memory_space<vmem>>, vector<1x256xf32>
    tpu.vector_store %arg8[%c0_26, %c0_27], %60 {strides = array<i32>} : memref<1x256xf32, #tpu.memory_space<vmem>>, vector<1x256xf32>,
    %c0_i32_28 = arith.constant 0 : i32
    %62 = arith.cmpi eq, %arg1, %c0_i32_28 : i32
    %63 = arith.extui %62 : i1 to i32
    %c0_i32_29 = arith.constant 0 : i32
    %64 = arith.cmpi ne, %63, %c0_i32_29 : i32
    scf.if %64 {
      %c0_30 = arith.constant 0 : index
      %c0_31 = arith.constant 0 : index
      %65 = vector.load %arg7[%c0_30, %c0_31] : memref<1x256xf32, #tpu.memory_space<vmem>>, vector<1x256xf32>
      %66 = vector.shape_cast %65 : vector<1x256xf32> to vector<1x1x256xf32>
      %cst_32 = arith.constant dense<0.000000e+00> : vector<1xf32>
      %67 = vector.multi_reduction <add>, %66, %cst_32 [1, 2] : vector<1x1x256xf32> to vector<1xf32>
      %68 = vector.shape_cast %67 : vector<1xf32> to vector<1x1x1xf32>
      %69 = vector.extract %68[0, 0, 0] : f32 from vector<1x1x1xf32>
      %70 = vector.broadcast %69 : f32 to vector<1x1x1xf32>
      %c0_33 = arith.constant 0 : index
      %c0_34 = arith.constant 0 : index
      %c0_35 = arith.constant 0 : index
      %71 = vector.load %arg5[%c0_33, %c0_34, %c0_35] : memref<1x1x1xf32, #tpu.memory_space<vmem>>, vector<1x1x1xf32>
      tpu.vector_store %arg5[%c0_33, %c0_34, %c0_35], %70 {strides = array<i32>} : memref<1x1x1xf32, #tpu.memory_space<vmem>>, vector<1x1x1xf32>,
      %c0_36 = arith.constant 0 : index
      %c0_37 = arith.constant 0 : index
      %72 = vector.load %arg8[%c0_36, %c0_37] : memref<1x256xf32, #tpu.memory_space<vmem>>, vector<1x256xf32>
      %73 = vector.shape_cast %72 : vector<1x256xf32> to vector<1x1x256xf32>
      %cst_38 = arith.constant dense<0.000000e+00> : vector<1xf32>
      %74 = vector.multi_reduction <add>, %73, %cst_38 [1, 2] : vector<1x1x256xf32> to vector<1xf32>
      %75 = vector.shape_cast %74 : vector<1xf32> to vector<1x1x1xf32>
      %76 = vector.extract %75[0, 0, 0] : f32 from vector<1x1x1xf32>
      %77 = vector.broadcast %76 : f32 to vector<1x1x1xf32>
      %c0_39 = arith.constant 0 : index
      %c0_40 = arith.constant 0 : index
      %c0_41 = arith.constant 0 : index
      %78 = vector.load %arg6[%c0_39, %c0_40, %c0_41] : memref<1x1x1xf32, #tpu.memory_space<vmem>>, vector<1x1x1xf32>
      tpu.vector_store %arg6[%c0_39, %c0_40, %c0_41], %77 {strides = array<i32>} : memref<1x1x1xf32, #tpu.memory_space<vmem>>, vector<1x1x1xf32>,
    } else {
    }
    return
  }
  func.func @transform_0(%arg0: i32, %arg1: i32) -> (i32, i32, i32) {
    %c0_i32 = arith.constant 0 : i32
    %c0_i32_0 = arith.constant 0 : i32
    return %arg0, %c0_i32, %arg1 : i32, i32, i32
  }
  func.func @transform_1(%arg0: i32, %arg1: i32) -> (i32, i32, i32) {
    %c0_i32 = arith.constant 0 : i32
    %c0_i32_0 = arith.constant 0 : i32
    return %arg0, %c0_i32, %arg1 : i32, i32, i32
  }
  func.func @transform_2(%arg0: i32, %arg1: i32) -> (i32, i32, i32) {
    %c0_i32 = arith.constant 0 : i32
    %c0_i32_0 = arith.constant 0 : i32
    return %arg0, %c0_i32, %arg1 : i32, i32, i32
  }
  func.func @transform_3(%arg0: i32, %arg1: i32) -> (i32, i32, i32) {
    %c0_i32 = arith.constant 0 : i32
    %c0_i32_0 = arith.constant 0 : i32
    %c0_i32_1 = arith.constant 0 : i32
    return %arg0, %c0_i32, %c0_i32_0 : i32, i32, i32
  }
  func.func @transform_4(%arg0: i32, %arg1: i32) -> (i32, i32, i32) {
    %c0_i32 = arith.constant 0 : i32
    %c0_i32_0 = arith.constant 0 : i32
    %c0_i32_1 = arith.constant 0 : i32
    return %arg0, %c0_i32, %c0_i32_0 : i32, i32, i32
  }
}

</mosaic_0001>

<llo_original>
// kernel: tpu_custom_call.1
$region0: #{tpu_custom_call.1}
  #allocation0 [shape = 'u32[]', space=smem, size = 0x4, offset = 0x4, fixed_abs, tag = 'smem constant byte address 0x4 - core index']
  #allocation1 [shape = 'u32[72,128]{1,0:T(1,128)}', space=vmem, size = 0x9000, scoped, tag = 'internal scratch']
  #allocation2 [shape = 'f32[1,256]{1,0:T(1,128)}', space=vmem, size = 0x400, scoped, tag = 'scratch operand']
  #allocation3 [shape = 'f32[1,256]{1,0:T(1,128)}', space=vmem, size = 0x400, scoped, tag = 'scratch operand']
  %s0 = inlined_call_operand.hbm [shape: f32[2,4,256], index: 0, kind: input, shape index: {}]
  %s1 = inlined_call_operand.hbm [shape: f32[2,4,256], index: 1, kind: input, shape index: {}]
  %s2 = inlined_call_operand.hbm [shape: s32[2,1,256], index: 2, kind: input, shape index: {}]
  %s3 = inlined_call_operand.vmem [shape: f32[2,1,1], index: 3, kind: output, shape index: {0}]
  %s4 = inlined_call_operand.vmem [shape: f32[2,1,1], index: 4, kind: output, shape index: {1}]
  %5 = xla_tuple %s3, %s4
  %s6 = sld [smem:[#allocation0]]
  $region73: #{tpu_custom_call.1} parent=0
    _
  %s8 = ssub.s32 1, %s6
  %s9 = scalar_select 0, %s8, %s6
  $region1: #{tpu_custom_call.1} parent=0
    #allocation4 [shape = 'u8[8192]{0}', space=vmem, size = 0x2000, scoped, tag = 'input window, operand 0']
    #allocation5 [shape = 's32[2]{0}', space=sflag, size = 0x8, scoped, tag = 'scoped memory for tpu_custom_call.1']
    #allocation6 [shape = 'u8[8192]{0}', space=vmem, size = 0x2000, scoped, tag = 'input window, operand 1']
    #allocation7 [shape = 's32[2]{0}', space=sflag, size = 0x8, scoped, tag = 'scoped memory for tpu_custom_call.1']
    #allocation8 [shape = 'u8[2048]{0}', space=vmem, size = 0x800, scoped, tag = 'input window, operand 2']
    %10 = vsyncpa [#allocation5], 0
    %s11 = scalar_lea.sflag [#allocation5], 1
    %12 = vsyncpa %s11, 0
    %13 = vsyncpa [#allocation7], 0
    %s14 = scalar_lea.sflag [#allocation7], 1
    %15 = vsyncpa %s14, 0
    loop: start=0, step=1, limit=4
    $region2: #{tpu_custom_call.1} parent=1 // loop_pre_header
      _
    $region3: #{tpu_custom_call.1} parent=1 // loop_header
      %s17 = sphi 0, %s21
      %p18 = scmp.ge.s32.totalorder %s17, 4
      %s24 = sphi 0, %s36
      %s25 = sphi 0, %s32
      %s26 = sphi 0, %s24
      %s27 = sphi 0, %s25
      %s28 = sphi 0, %s26
      %s29 = sphi 0, %s27
      %s41 = sphi 0, %s43
      %s44 = sphi 0, %s41
      %s45 = sphi 0, %s44
      %s61 = sphi 0, %s45
      %s69 = sphi 0, %s71
      %s72 = sphi 0, %s69
      %s73 = sphi 0, %s72
      %s89 = sphi 0, %s73
      %s97 = sphi 0, %s99
      %s100 = sphi 0, %s97
      %s101 = sphi 0, %s100
      %s117 = sphi 0, %s101
      %s123 = sphi 0, %s125
      %s126 = sphi 0, %s123
      %s127 = sphi 0, %s126
      %s143 = sphi 0, %s127
      %s149 = sphi 0, %s151
      %s152 = sphi 0, %s149
      %s153 = sphi 0, %s152
      %s169 = sphi 0, %s153
    $region4: #{tpu_custom_call.1} parent=1 // loop_header_branch
      %20 = sbr.rel (%p18) target = $region8
    $region5: #{tpu_custom_call.1} parent=1 // loop_body
      %s22 = ssub.s32 %s17, 1
      %s23 = ssub.s32 %s17, 2
      %s30 = sadd.s32 1, %s25
      %p31 = scmp.ge.s32.totalorder %s30, 1
      %s32 = scalar_select %p31, 0, %s30
      %s33 = sadd.s32 1, %s24
      %s34 = scalar_select %p31, %s33, %s24
      %p35 = scmp.ge.s32.totalorder %s34, 2
      %s36 = scalar_select %p35, 0, %s34
      %s37 = ssub.s32 %s24, %s36
      %s38 = ssub.s32 %s25, %s32
      %s39 = sor.u32 %s37, %s38
      %p40 = scmp.eq.s32.totalorder %s39, 0
      %s42 = sadd.s32 %s41, 1
      %s43 = scalar_select %p40, %s41, %s42
      %p46 = pneg %p40
      %p47 = scmp.eq.s32.totalorder %s17, 1
      %p48 = por %p46, %p47
      %p49 = scmp.ne.s32.totalorder %s41, %s44
      %p50 = scmp.eq.s32.totalorder %s17, 0
      %p51 = por %p49, %p50
      %p52 = scmp.ne.s32.totalorder %s41, %s44
      %p53 = scmp.eq.s32.totalorder %s22, 1
      %p54 = por %p52, %p53
      %p55 = scmp.ne.s32.totalorder %s44, %s45
      %p56 = scmp.eq.s32.totalorder %s22, 0
      %p57 = por %p55, %p56
      %p58 = scmp.ne.s32.totalorder %s44, %s45
      %p59 = scmp.eq.s32.totalorder %s23, 1
      %p60 = por %p58, %p59
      %p62 = scmp.ne.s32.totalorder %s45, %s61
      %p63 = scmp.eq.s32.totalorder %s23, 0
      %p64 = por %p62, %p63
      %s65 = ssub.s32 %s24, %s36
      %s66 = ssub.s32 %s25, %s32
      %s67 = sor.u32 %s65, %s66
      %p68 = scmp.eq.s32.totalorder %s67, 0
      %s70 = sadd.s32 %s69, 1
      %s71 = scalar_select %p68, %s69, %s70
      %p74 = pneg %p68
      %p75 = scmp.eq.s32.totalorder %s17, 1
      %p76 = por %p74, %p75
      %p77 = scmp.ne.s32.totalorder %s69, %s72
      %p78 = scmp.eq.s32.totalorder %s17, 0
      %p79 = por %p77, %p78
      %p80 = scmp.ne.s32.totalorder %s69, %s72
      %p81 = scmp.eq.s32.totalorder %s22, 1
      %p82 = por %p80, %p81
      %p83 = scmp.ne.s32.totalorder %s72, %s73
      %p84 = scmp.eq.s32.totalorder %s22, 0
      %p85 = por %p83, %p84
      %p86 = scmp.ne.s32.totalorder %s72, %s73
      %p87 = scmp.eq.s32.totalorder %s23, 1
      %p88 = por %p86, %p87
      %p90 = scmp.ne.s32.totalorder %s73, %s89
      %p91 = scmp.eq.s32.totalorder %s23, 0
      %p92 = por %p90, %p91
      %s93 = ssub.s32 %s24, %s36
      %s94 = ssub.s32 %s25, %s32
      %s95 = sor.u32 %s93, %s94
      %p96 = scmp.eq.s32.totalorder %s95, 0
      %s98 = sadd.s32 %s97, 1
      %s99 = scalar_select %p96, %s97, %s98
      %p102 = pneg %p96
      %p103 = scmp.eq.s32.totalorder %s17, 1
      %p104 = por %p102, %p103
      %p105 = scmp.ne.s32.totalorder %s97, %s100
      %p106 = scmp.eq.s32.totalorder %s17, 0
      %p107 = por %p105, %p106
      %p108 = scmp.ne.s32.totalorder %s97, %s100
      %p109 = scmp.eq.s32.totalorder %s22, 1
      %p110 = por %p108, %p109
      %p111 = scmp.ne.s32.totalorder %s100, %s101
      %p112 = scmp.eq.s32.totalorder %s22, 0
      %p113 = por %p111, %p112
      %p114 = scmp.ne.s32.totalorder %s100, %s101
      %p115 = scmp.eq.s32.totalorder %s23, 1
      %p116 = por %p114, %p115
      %p118 = scmp.ne.s32.totalorder %s101, %s117
      %p119 = scmp.eq.s32.totalorder %s23, 0
      %p120 = por %p118, %p119
      %s121 = ssub.s32 %s24, %s36
      %p122 = scmp.eq.s32.totalorder %s121, 0
      %s124 = sadd.s32 %s123, 1
      %s125 = scalar_select %p122, %s123, %s124
      %p128 = pneg %p122
      %p129 = scmp.eq.s32.totalorder %s17, 1
      %p130 = por %p128, %p129
      %p131 = scmp.ne.s32.totalorder %s123, %s126
      %p132 = scmp.eq.s32.totalorder %s17, 0
      %p133 = por %p131, %p132
      %p134 = scmp.ne.s32.totalorder %s123, %s126
      %p135 = scmp.eq.s32.totalorder %s22, 1
      %p136 = por %p134, %p135
      %p137 = scmp.ne.s32.totalorder %s126, %s127
      %p138 = scmp.eq.s32.totalorder %s22, 0
      %p139 = por %p137, %p138
      %p140 = scmp.ne.s32.totalorder %s126, %s127
      %p141 = scmp.eq.s32.totalorder %s23, 1
      %p142 = por %p140, %p141
      %p144 = scmp.ne.s32.totalorder %s127, %s143
      %p145 = scmp.eq.s32.totalorder %s23, 0
      %p146 = por %p144, %p145
      %s147 = ssub.s32 %s24, %s36
      %p148 = scmp.eq.s32.totalorder %s147, 0
      %s150 = sadd.s32 %s149, 1
      %s151 = scalar_select %p148, %s149, %s150
      %p154 = pneg %p148
      %p155 = scmp.eq.s32.totalorder %s17, 1
      %p156 = por %p154, %p155
      %p157 = scmp.ne.s32.totalorder %s149, %s152
      %p158 = scmp.eq.s32.totalorder %s17, 0
      %p159 = por %p157, %p158
      %p160 = scmp.ne.s32.totalorder %s149, %s152
      %p161 = scmp.eq.s32.totalorder %s22, 1
      %p162 = por %p160, %p161
      %p163 = scmp.ne.s32.totalorder %s152, %s153
      %p164 = scmp.eq.s32.totalorder %s22, 0
      %p165 = por %p163, %p164
      %p166 = scmp.ne.s32.totalorder %s152, %s153
      %p167 = scmp.eq.s32.totalorder %s23, 1
      %p168 = por %p166, %p167
      %p170 = scmp.ne.s32.totalorder %s153, %s169
      %p171 = scmp.eq.s32.totalorder %s23, 0
      %p172 = por %p170, %p171
      %p173 = scmp.le.s32.totalorder 1, %s17
      %p174 = scmp.lt.s32.totalorder %s17, 3
      %p175 = pnand %p173, %p174
      %p176 = pneg %p175
      // Predicated region
      $region9: #{tpu_custom_call.1} parent=5 // pred_check
        _
      $region10: #{tpu_custom_call.1} parent=5 // pred_check_branch
        %178 = sbr.rel (%p175) target = $region12
      $region11: #{tpu_custom_call.1} parent=5 // pred_region
        %s179 = ssub.s32 %s17, 1
      $region12: #{tpu_custom_call.1} parent=5 // pred_fallthru
        _
      %p180 = scmp.lt.s32.totalorder %s17, 2
      // Predicated region
      $region13: #{tpu_custom_call.1} parent=5 // pred_check
        %p181 = pneg %p180
      $region14: #{tpu_custom_call.1} parent=5 // pred_check_branch
        %183 = sbr.rel (%p181) target = $region16
      $region15: #{tpu_custom_call.1} parent=5 // pred_region
        // Predicated region
        $region17: #{tpu_custom_call.1} parent=15 // pred_check
          %p184 = pneg %p51
        $region18: #{tpu_custom_call.1} parent=15 // pred_check_branch
          %186 = sbr.rel (%p184) target = $region20
        $region19: #{tpu_custom_call.1} parent=15 // pred_region
          %s187 = sand.u32 %s41, 1
          %s188 = scalar_lea.sflag [#allocation5], %s187
          %s189 = sand.u32 %s41, 1
          %s190 = smul.addr %s189, 8
          %s191 = scalar_lea.vmem [#allocation4], %s190
          %s192 = smul.u32 2, %s25
          %194 = vsyncadd %s188, 0
          %s195 = smul.addr %s24, 2
          %s196 = sadd.s32 %s192, %s195
          %s197 = smul.addr %s196, 4
          %s198 = scalar_lea.hbm %s0, %s197
          %s200 = sshll.u32 %s198, 4
          %s201 = int_to_ptr.hbm [resolvable:$true] %s200
          %s202 = sshll.u32 %s191, 4
          %s203 = int_to_ptr.vmem [resolvable:$true] %s202
          %205 = dma.hbm_to_vmem [thread:$0]  %s201, 128, %s203, %s188
        $region20: #{tpu_custom_call.1} parent=15 // pred_fallthru
          _
        // Predicated region
        $region21: #{tpu_custom_call.1} parent=15 // pred_check
          %p206 = pneg %p79
        $region22: #{tpu_custom_call.1} parent=15 // pred_check_branch
          %208 = sbr.rel (%p206) target = $region24
        $region23: #{tpu_custom_call.1} parent=15 // pred_region
          %s209 = sand.u32 %s17, 1
          %s210 = scalar_lea.sflag [#allocation7], %s209
          %s211 = sand.u32 %s69, 1
          %s212 = smul.addr %s211, 8
          %s213 = scalar_lea.vmem [#allocation6], %s212
          %s214 = smul.u32 2, %s25
          %216 = vsyncadd %s210, 0
          %s217 = smul.addr %s24, 2
          %s218 = sadd.s32 %s214, %s217
          %s219 = smul.addr %s218, 4
          %s220 = scalar_lea.hbm %s1, %s219
          %s222 = sshll.u32 %s220, 4
          %s223 = int_to_ptr.hbm [resolvable:$true] %s222
          %s224 = sshll.u32 %s213, 4
          %s225 = int_to_ptr.vmem [resolvable:$true] %s224
          %227 = dma.hbm_to_vmem [thread:$0]  %s223, 128, %s225, %s210
        $region24: #{tpu_custom_call.1} parent=15 // pred_fallthru
          _
        // Predicated region
        $region25: #{tpu_custom_call.1} parent=15 // pred_check
          %p228 = pneg %p107
        $region26: #{tpu_custom_call.1} parent=15 // pred_check_branch
          %230 = sbr.rel (%p228) target = $region28
        $region27: #{tpu_custom_call.1} parent=15 // pred_region
          %s231 = sand.u32 %s17, 1
          %s232 = scalar_lea.sflag [#allocation7], %s231
          %s233 = sand.u32 %s97, 1
          %s234 = smul.addr %s233, 2
          %s235 = scalar_lea.vmem [#allocation8], %s234
          %s236 = smul.u32 2, %s25
          %238 = vsyncadd %s232, 0
          %s239 = smul.addr %s24, 2
          %s240 = sadd.s32 %s236, %s239
          %s241 = scalar_lea.hbm %s2, %s240
          %s243 = sshll.u32 %s241, 4
          %s244 = int_to_ptr.hbm [resolvable:$true] %s243
          %s245 = sshll.u32 %s235, 4
          %s246 = int_to_ptr.vmem [resolvable:$true] %s245
          %248 = dma.hbm_to_vmem [thread:$0]  %s244, 32, %s246, %s232
        $region28: #{tpu_custom_call.1} parent=15 // pred_fallthru
          _
      $region16: #{tpu_custom_call.1} parent=5 // pred_fallthru
        _
      %p249 = scmp.le.s32.totalorder 1, %s17
      %p250 = scmp.lt.s32.totalorder %s17, 3
      %p251 = pnand %p249, %p250
      %p252 = pneg %p251
      // Predicated region
      $region29: #{tpu_custom_call.1} parent=5 // pred_check
        _
      $region30: #{tpu_custom_call.1} parent=5 // pred_check_branch
        %254 = sbr.rel (%p251) target = $region32
      $region31: #{tpu_custom_call.1} parent=5 // pred_region
        %s255 = ssub.s32 %s17, 1
        %s256 = sand.u32 %s44, 1
        %s257 = scalar_lea.sflag [#allocation5], %s256
        %s258 = sand.u32 %s44, 1
        %s259 = smul.addr %s258, 8
        %s260 = scalar_lea.vmem [#allocation4], %s259
        // Predicated region
        $region33: #{tpu_custom_call.1} parent=31 // pred_check
          %p261 = pneg %p57
        $region34: #{tpu_custom_call.1} parent=31 // pred_check_branch
          %263 = sbr.rel (%p261) target = $region36
        $region35: #{tpu_custom_call.1} parent=31 // pred_region
          %265 = dma.done %s257, 128
        $region36: #{tpu_custom_call.1} parent=31 // pred_fallthru
          _
        %s266 = sand.u32 %s22, 1
        %s267 = scalar_lea.sflag [#allocation7], %s266
        %s268 = sand.u32 %s72, 1
        %s269 = smul.addr %s268, 8
        %s270 = scalar_lea.vmem [#allocation6], %s269
        // Predicated region
        $region37: #{tpu_custom_call.1} parent=31 // pred_check
          %p271 = pneg %p85
        $region38: #{tpu_custom_call.1} parent=31 // pred_check_branch
          %273 = sbr.rel (%p271) target = $region40
        $region39: #{tpu_custom_call.1} parent=31 // pred_region
          %275 = dma.done %s267, 128
        $region40: #{tpu_custom_call.1} parent=31 // pred_fallthru
          _
        %s276 = sand.u32 %s22, 1
        %s277 = scalar_lea.sflag [#allocation7], %s276
        %s278 = sand.u32 %s100, 1
        %s279 = smul.addr %s278, 2
        %s280 = scalar_lea.vmem [#allocation8], %s279
        // Predicated region
        $region41: #{tpu_custom_call.1} parent=31 // pred_check
          %p281 = pneg %p113
        $region42: #{tpu_custom_call.1} parent=31 // pred_check_branch
          %283 = sbr.rel (%p281) target = $region44
        $region43: #{tpu_custom_call.1} parent=31 // pred_region
          %285 = dma.done %s277, 32
        $region44: #{tpu_custom_call.1} parent=31 // pred_fallthru
          _
        %s286 = sand.u32 %s44, 1
        %s287 = scalar_lea.sflag [#allocation5], %s286
        %s288 = sand.u32 %s44, 1
        %s289 = smul.addr %s288, 8
        %s290 = scalar_lea.vmem [#allocation4], %s289
        %p291 = pneg %p57
        %p292 = pneg %p54
        %s293 = sand.u32 %s22, 1
        %s294 = scalar_lea.sflag [#allocation7], %s293
        %s295 = sand.u32 %s72, 1
        %s296 = smul.addr %s295, 8
        %s297 = scalar_lea.vmem [#allocation6], %s296
        %p298 = pneg %p85
        %p299 = pneg %p82
        %s300 = sand.u32 %s22, 1
        %s301 = scalar_lea.sflag [#allocation7], %s300
        %s302 = sand.u32 %s100, 1
        %s303 = smul.addr %s302, 2
        %s304 = scalar_lea.vmem [#allocation8], %s303
        %p305 = pneg %p113
        %p306 = pneg %p110
        %p307 = pneg %p139
        %p308 = pneg %p136
        %p309 = scmp.lt.s32.totalorder %s26, 1
        %s310 = scalar_select %p309, %s26, 1
        %s311 = scalar_lea.vmem %s3, %s310
        %p312 = pneg %p165
        %p313 = pneg %p162
        %p314 = scmp.lt.s32.totalorder %s26, 1
        %s315 = scalar_select %p314, %s26, 1
        %s316 = scalar_lea.vmem %s4, %s315
        %s317 = smul.u32 2, %s27
        %s318 = smul.u32 2, %s27
        %s319 = smul.u32 2, %s27
        %p320 = scmp.lt.s32.totalorder %s26, 1
        %s321 = scalar_select %p320, %s26, 1
        %s322 = scalar_lea.vmem %s3, %s321
        %p323 = scmp.lt.s32.totalorder %s26, 1
        %s324 = scalar_select %p323, %s26, 1
        %s325 = scalar_lea.vmem %s4, %s324
        %p326 = scmp.eq.s32.totalorder %s27, 0
        // Predicated region
        $region45: #{tpu_custom_call.1} parent=31 // pred_check
          %p327 = pneg %p326
        $region46: #{tpu_custom_call.1} parent=31 // pred_check_branch
          %329 = sbr.rel (%p327) target = $region48
        $region47: #{tpu_custom_call.1} parent=31 // pred_region
          %v330 = vlaneseq
          %vm331 = vcmp.ge.s32.totalorder %v330, 0
          %vm332 = vcmp.lt.s32.totalorder %v330, 256
          %vm333 = vmand %vm331, %vm332
          %334 = vst.msk [vmem:[#allocation2] sm:$0x3] %vm333, 0.0
          %335 = vst.msk [vmem:[#allocation3] sm:$0x3] %vm333, 0.0
        $region48: #{tpu_custom_call.1} parent=31 // pred_fallthru
          _
        %v336 = vld [vmem:[%s280] sm:$0x3]
        %s337 = smul.u32 %s27, 256
        %v338 = vlaneseq
        %v339 = vand.u32 %v338, 127
        %v340 = vadd.s32 %v339, 128
        %v341 = vstv %s337
        %v342 = vadd.s32 %v341, %v339
        %v343 = vadd.s32 %v341, %v340
        %vm344 = vcmp.ne.s32.totalorder %v336, 255
        %vm345 = vcmp.lt.s32.totalorder %v342, 256
        %vm346 = vcmp.lt.s32.totalorder %v343, 256
        %v347 = vsel %vm345, 1, 0
        %v348 = vsel %vm346, 1, 0
        %v349 = vrot.slane %v348, 7
        %vm350 = vcmask 1040384
        %v351 = vsel %vm350, %v347, %v349
        %vm352 = vcmp.ne.s32.totalorder %v351, 0
        %vm353 = vmand %vm344, %vm352
        %v354 = vsel %vm353, 1, 0
        %v355 = vcvt.s32.f32 %v354
        %v356 = vlaneseq
        %v357 = vshrl.u32 %v356, 7
        %v358 = vperm.slane %v336, 0
        %v359 = vperm.slane %v336, 1
        %vm360 = vcmp.eq.s32.totalorder %v357, %v358
        %vm361 = vcmp.eq.s32.totalorder %v357, %v359
        %v362 = vld [vmem:[%s260] sm:$0xff]
        %364 = vst [vmem:[#allocation1] ss:$2 sm:$0xff] %v362
        %v365 = vld.sshfl [vmem:[#allocation1] sm:$0xff pattern:$0x75316420]
        %v366 = vld.sshfl [vmem:[#allocation1 + $0x8] sm:$0xff pattern:$0x75316420]
        %vm369 = vcmask 1043456
        %v370 = vsel %vm369, %v365, -inf
        %v371 = vrot.slane %v370, 4
        %v372 = vmax.f32 %v370, %v371
        %v373 = vrot.slane %v372, 2
        %v374 = vmax.f32 %v372, %v373
        %v375 = vrot.slane %v374, 1
        %v376 = vmax.f32 %v374, %v375
        %v377 = vsel %vm369, %v366, -inf
        %v378 = vrot.slane %v377, 4
        %v379 = vmax.f32 %v377, %v378
        %v380 = vrot.slane %v379, 2
        %v381 = vmax.f32 %v379, %v380
        %v382 = vrot.slane %v381, 1
        %v383 = vmax.f32 %v381, %v382
        %v386 = vrot.slane %v383, 4
        %v387 = vsel %vm369, %v376, %v386
        %v389 = vsub.f32 %v362, %v387
        %v390 = vmul.f32 %v389, 1.442695
        %v391 = vpow.pop %v390
        %393 = vst [vmem:[#allocation1] ss:$2 sm:$0xff] %v391
        %v394 = vld.sshfl [vmem:[#allocation1] sm:$0xff pattern:$0x75316420]
        %v395 = vld.sshfl [vmem:[#allocation1 + $0x8] sm:$0xff pattern:$0x75316420]
        %v398 = vsel %vm369, %v394, 0.0
        %v399 = vrot.slane %v398, 4
        %v400 = vadd.f32 %v398, %v399
        %v401 = vrot.slane %v400, 2
        %v402 = vadd.f32 %v400, %v401
        %v403 = vrot.slane %v402, 1
        %v404 = vadd.f32 %v402, %v403
        %v405 = vsel %vm369, %v395, 0.0
        %v406 = vrot.slane %v405, 4
        %v407 = vadd.f32 %v405, %v406
        %v408 = vrot.slane %v407, 2
        %v409 = vadd.f32 %v407, %v408
        %v410 = vrot.slane %v409, 1
        %v411 = vadd.f32 %v409, %v410
        %413 = vst [vmem:[#allocation1] ss:$2 sm:$0xff] %v389
        %v414 = vld.sshfl [vmem:[#allocation1] sm:$0xff pattern:$0x75316420]
        %v415 = vld.sshfl [vmem:[#allocation1 + $0x8] sm:$0xff pattern:$0x75316420]
        %v418 = vsel %vm360, %v414, 0.0
        %v419 = vsel %vm361, %v415, 0.0
        %v420 = vsel %vm369, %v418, 0.0
        %v421 = vrot.slane %v420, 4
        %v422 = vadd.f32 %v420, %v421
        %v423 = vrot.slane %v422, 2
        %v424 = vadd.f32 %v422, %v423
        %v425 = vrot.slane %v424, 1
        %v426 = vadd.f32 %v424, %v425
        %v427 = vsel %vm369, %v419, 0.0
        %v428 = vrot.slane %v427, 4
        %v429 = vadd.f32 %v427, %v428
        %v430 = vrot.slane %v429, 2
        %v431 = vadd.f32 %v429, %v430
        %v432 = vrot.slane %v431, 1
        %v433 = vadd.f32 %v431, %v432
        %v434 = vlog2.pop %v404
        %v435 = vmul.f32 %v434, 0.6931472
        %v436 = vlog2.pop %v411
        %v437 = vmul.f32 %v436, 0.6931472
        %v438 = vsub.f32 %v435, %v426
        %v439 = vsub.f32 %v437, %v433
        %v442 = vrot.slane %v439, 7
        %v443 = vsel %vm350, %v438, %v442
        %v445 = vsel %vm353, %v443, 0.0
        %v446 = vld [vmem:[%s270] sm:$0xff]
        %448 = vst [vmem:[#allocation1] ss:$2 sm:$0xff] %v446
        %v449 = vld.sshfl [vmem:[#allocation1] sm:$0xff pattern:$0x75316420]
        %v450 = vld.sshfl [vmem:[#allocation1 + $0x8] sm:$0xff pattern:$0x75316420]
        %v453 = vsel %vm369, %v449, -inf
        %v454 = vrot.slane %v453, 4
        %v455 = vmax.f32 %v453, %v454
        %v456 = vrot.slane %v455, 2
        %v457 = vmax.f32 %v455, %v456
        %v458 = vrot.slane %v457, 1
        %v459 = vmax.f32 %v457, %v458
        %v460 = vsel %vm369, %v450, -inf
        %v461 = vrot.slane %v460, 4
        %v462 = vmax.f32 %v460, %v461
        %v463 = vrot.slane %v462, 2
        %v464 = vmax.f32 %v462, %v463
        %v465 = vrot.slane %v464, 1
        %v466 = vmax.f32 %v464, %v465
        %v469 = vrot.slane %v466, 4
        %v470 = vsel %vm369, %v459, %v469
        %v472 = vsub.f32 %v446, %v470
        %v473 = vmul.f32 %v472, 1.442695
        %v474 = vpow.pop %v473
        %476 = vst [vmem:[#allocation1] ss:$2 sm:$0xff] %v474
        %v477 = vld.sshfl [vmem:[#allocation1] sm:$0xff pattern:$0x75316420]
        %v478 = vld.sshfl [vmem:[#allocation1 + $0x8] sm:$0xff pattern:$0x75316420]
        %v481 = vsel %vm369, %v477, 0.0
        %v482 = vrot.slane %v481, 4
        %v483 = vadd.f32 %v481, %v482
        %v484 = vrot.slane %v483, 2
        %v485 = vadd.f32 %v483, %v484
        %v486 = vrot.slane %v485, 1
        %v487 = vadd.f32 %v485, %v486
        %v488 = vsel %vm369, %v478, 0.0
        %v489 = vrot.slane %v488, 4
        %v490 = vadd.f32 %v488, %v489
        %v491 = vrot.slane %v490, 2
        %v492 = vadd.f32 %v490, %v491
        %v493 = vrot.slane %v492, 1
        %v494 = vadd.f32 %v492, %v493
        %496 = vst [vmem:[#allocation1] ss:$2 sm:$0xff] %v472
        %v497 = vld.sshfl [vmem:[#allocation1] sm:$0xff pattern:$0x75316420]
        %v498 = vld.sshfl [vmem:[#allocation1 + $0x8] sm:$0xff pattern:$0x75316420]
        %v501 = vsel %vm360, %v497, 0.0
        %v502 = vsel %vm361, %v498, 0.0
        %v503 = vsel %vm369, %v501, 0.0
        %v504 = vrot.slane %v503, 4
        %v505 = vadd.f32 %v503, %v504
        %v506 = vrot.slane %v505, 2
        %v507 = vadd.f32 %v505, %v506
        %v508 = vrot.slane %v507, 1
        %v509 = vadd.f32 %v507, %v508
        %v510 = vsel %vm369, %v502, 0.0
        %v511 = vrot.slane %v510, 4
        %v512 = vadd.f32 %v510, %v511
        %v513 = vrot.slane %v512, 2
        %v514 = vadd.f32 %v512, %v513
        %v515 = vrot.slane %v514, 1
        %v516 = vadd.f32 %v514, %v515
        %v517 = vlog2.pop %v487
        %v518 = vmul.f32 %v517, 0.6931472
        %v519 = vlog2.pop %v494
        %v520 = vmul.f32 %v519, 0.6931472
        %v521 = vsub.f32 %v518, %v509
        %v522 = vsub.f32 %v520, %v516
        %v525 = vrot.slane %v522, 7
        %v526 = vsel %vm350, %v521, %v525
        %v528 = vsel %vm353, %v526, 0.0
        %v529 = vmul.f32 %v528, 0.4
        %v530 = vadd.f32 %v445, %v529
        %v531 = vld [vmem:[#allocation2] sm:$0x3]
        %v532 = vadd.f32 %v531, %v530
        %v533 = vlaneseq
        %vm534 = vcmp.ge.s32.totalorder %v533, 0
        %vm535 = vcmp.lt.s32.totalorder %v533, 256
        %vm536 = vmand %vm534, %vm535
        %537 = vst.msk [vmem:[#allocation2] sm:$0x3] %vm536, %v532
        %v538 = vld [vmem:[#allocation3] sm:$0x3]
        %v539 = vadd.f32 %v538, %v355
        %540 = vst.msk [vmem:[#allocation3] sm:$0x3] %vm536, %v539
        // Predicated region
        $region49: #{tpu_custom_call.1} parent=31 // pred_check
          %p541 = pneg %p326
        $region50: #{tpu_custom_call.1} parent=31 // pred_check_branch
          %543 = sbr.rel (%p541) target = $region52
        $region51: #{tpu_custom_call.1} parent=31 // pred_region
          %v544 = vld [vmem:[#allocation2] sm:$0x3]
          %v546 = vperm.slane %v544, 0
          %v547 = vperm.slane %v544, 1
          %v550 = vsel %vm350, %v546, 0.0
          %v551 = vsel %vm350, %v547, 0.0
          %v552 = vadd.f32 %v550, %v551
          %553 = vadd.xlane.f32.xlu0 %v552
          %v554 = vpop.xlane.xlu0 %553
          %v555 = vrot.slane %v554, 4
          %v556 = vadd.f32 %v554, %v555
          %v557 = vrot.slane %v556, 2
          %v558 = vadd.f32 %v556, %v557
          %v559 = vrot.slane %v558, 1
          %v560 = vadd.f32 %v558, %v559
          %s561 = vtos %v560
          %v562 = vstv %s561
          %vm563 = vcmask 0
          %564 = vst.msk [vmem:[%s322] sm:$0x1] %vm563, %v562
          %v565 = vld [vmem:[#allocation3] sm:$0x3]
          %v567 = vperm.slane %v565, 0
          %v568 = vperm.slane %v565, 1
          %v571 = vsel %vm350, %v567, 0.0
          %v572 = vsel %vm350, %v568, 0.0
          %v573 = vadd.f32 %v571, %v572
          %574 = vadd.xlane.f32.xlu0 %v573
          %v575 = vpop.xlane.xlu0 %574
          %v576 = vrot.slane %v575, 4
          %v577 = vadd.f32 %v575, %v576
          %v578 = vrot.slane %v577, 2
          %v579 = vadd.f32 %v577, %v578
          %v580 = vrot.slane %v579, 1
          %v581 = vadd.f32 %v579, %v580
          %s582 = vtos %v581
          %v583 = vstv %s582
          %584 = vst.msk [vmem:[%s325] sm:$0x1] %vm563, %v583
        $region52: #{tpu_custom_call.1} parent=31 // pred_fallthru
          _
        %p585 = scmp.lt.s32.totalorder %s26, 1
        %s586 = scalar_select %p585, %s26, 1
        %s587 = scalar_lea.vmem %s3, %s586
        %p588 = scmp.lt.s32.totalorder %s26, 1
        %s589 = scalar_select %p588, %s26, 1
        %s590 = scalar_lea.vmem %s4, %s589
        // Predicated region
        $region53: #{tpu_custom_call.1} parent=31 // pred_check
          %p591 = pneg %p136
        $region54: #{tpu_custom_call.1} parent=31 // pred_check_branch
          %593 = sbr.rel (%p591) target = $region56
        $region55: #{tpu_custom_call.1} parent=31 // pred_region
          _
        $region56: #{tpu_custom_call.1} parent=31 // pred_fallthru
          _
        // Predicated region
        $region57: #{tpu_custom_call.1} parent=31 // pred_check
          %p594 = pneg %p162
        $region58: #{tpu_custom_call.1} parent=31 // pred_check_branch
          %596 = sbr.rel (%p594) target = $region60
        $region59: #{tpu_custom_call.1} parent=31 // pred_region
          _
        $region60: #{tpu_custom_call.1} parent=31 // pred_fallthru
          _
      $region32: #{tpu_custom_call.1} parent=5 // pred_fallthru
        _
      %p597 = scmp.le.s32.totalorder 2, %s17
      // Predicated region
      $region61: #{tpu_custom_call.1} parent=5 // pred_check
        %p598 = pneg %p597
      $region62: #{tpu_custom_call.1} parent=5 // pred_check_branch
        %600 = sbr.rel (%p598) target = $region64
      $region63: #{tpu_custom_call.1} parent=5 // pred_region
        %s601 = ssub.s32 %s17, 2
        // Predicated region
        $region65: #{tpu_custom_call.1} parent=63 // pred_check
          %p602 = pneg %p142
        $region66: #{tpu_custom_call.1} parent=63 // pred_check_branch
          %604 = sbr.rel (%p602) target = $region68
        $region67: #{tpu_custom_call.1} parent=63 // pred_region
          %p605 = scmp.lt.s32.totalorder %s28, 1
          %s606 = scalar_select %p605, %s28, 1
          %s607 = scalar_lea.vmem %s3, %s606
        $region68: #{tpu_custom_call.1} parent=63 // pred_fallthru
          _
        // Predicated region
        $region69: #{tpu_custom_call.1} parent=63 // pred_check
          %p608 = pneg %p168
        $region70: #{tpu_custom_call.1} parent=63 // pred_check_branch
          %610 = sbr.rel (%p608) target = $region72
        $region71: #{tpu_custom_call.1} parent=63 // pred_region
          %p611 = scmp.lt.s32.totalorder %s28, 1
          %s612 = scalar_select %p611, %s28, 1
          %s613 = scalar_lea.vmem %s4, %s612
        $region72: #{tpu_custom_call.1} parent=63 // pred_fallthru
          _
      $region64: #{tpu_custom_call.1} parent=5 // pred_fallthru
        _
    $region6: #{tpu_custom_call.1} parent=1 // loop_footer
      %s21 = sadd.s32 1, %s17
    $region7: #{tpu_custom_call.1} parent=1 // loop_footer_branch
      %16 = sbr.rel target = $region3
    $region8: #{tpu_custom_call.1} parent=1 // loop_exit
      _
    %614 = vsyncpa [#allocation5], 1
    %s615 = scalar_lea.sflag [#allocation5], 1
    %616 = vsyncpa %s615, 1
    %617 = vsyncpa [#allocation7], 1
    %s618 = scalar_lea.sflag [#allocation7], 1
    %619 = vsyncpa %s618, 1

</llo_original>
